<compile_context>
chip_gen: v7x
topology: tpu7x:2x2x1
jax: 0.10.0
libtpu: 0.0.40
codegen_flags: <defaults>
</compile_context>

<pallas_src>
import jax
import jax.numpy as jnp
from jax.experimental import pallas as pl
from jax.experimental.pallas import tpu as pltpu


TILE_BYTES = 4 * 1024 * 1024          # ~4 MiB per tile in the input dtype
VMEM_LIMIT_BYTES = 32 * 1024 * 1024   # 2 x (in+out) buffers + f32 temps + headroom


def ln_kernel(a_ref, b_ref, x_ref, o_ref):
    # a_ref / b_ref: (1, 1) scalars in SMEM; x_ref / o_ref: 2-D VMEM tiles.
    a = a_ref[0, 0]
    b = b_ref[0, 0]
    # f32 compute is required on v5e (no bf16 EUP) and is a no-op cast for f32
    # inputs; the HBM stream stays in the original dtype either way.
    x = x_ref[...].astype(jnp.float32)
    o_ref[...] = (a * jnp.log(jnp.abs(b * x))).astype(o_ref.dtype)


def _round_up(x, m):
    return ((x + m - 1) // m) * m


def ln_model_forward(x, a, b):
    """x: any-shape float array; a, b: scalar parameters."""
    orig_shape = x.shape
    orig_dtype = x.dtype
    n = x.size
    itemsize = jnp.dtype(orig_dtype).itemsize

    a2d = jnp.asarray(a, jnp.float32).reshape(1, 1)
    b2d = jnp.asarray(b, jnp.float32).reshape(1, 1)

    cost = pl.CostEstimate(
        flops=2 * n,                       # mul + scale per element
        transcendentals=n,                 # one log per element
        bytes_accessed=2 * n * itemsize,   # 1 load + 1 store per element
    )

    # ---- choose a padding-free 2-D view + tiling ------------------------
    cols = None
    for c in (1024, 512, 256, 128):
        if n % c == 0:
            cols = c
            break

    if cols is not None:
        # (rows, cols) slab, cols is a multiple of 128 -> tile along rows.
        rows = n // cols
        x2d = x.reshape(rows, cols)

        cap = max(8, (TILE_BYTES // (cols * itemsize)) // 8 * 8)
        if rows <= 8:
            tile_rows = rows              # block dim == full dim -> always legal
        else:
            # Keep >= 2 grid steps so both v7x TensorCores can stream.
            half_rows = max(8, _round_up(-(-rows // 2), 8))
            tile_rows = min(cap, half_rows)
        grid = (pl.cdiv(rows, tile_rows),)
        block_shape = (tile_rows, cols)
        index_map = lambda i: (i, 0)
    else:
        # No 128-multiple factorization: keep a (1, n) view and tile along
        # lanes; the final partial block is masked by Pallas (no pad copy).
        x2d = x.reshape(1, n)
        if n <= 128:
            tile_cols = n                 # block dim == full dim -> legal
        else:
            cap = max(128, (TILE_BYTES // itemsize) // 128 * 128)
            half_cols = max(128, _round_up(-(-n // 2), 128))
            tile_cols = min(cap, half_cols)
        grid = (pl.cdiv(n, tile_cols),)
        block_shape = (1, tile_cols)
        index_map = lambda i: (0, i)

    # TODO(synk): callers that can donate x may add input_output_aliases={2: 0}
    # to reuse the input HBM buffer for the output.
    out2d = pl.pallas_call(
        ln_kernel,
        out_shape=jax.ShapeDtypeStruct(x2d.shape, orig_dtype),
        grid=grid,
        in_specs=[
            pl.BlockSpec(memory_space=pltpu.MemorySpace.SMEM),   # a
            pl.BlockSpec(memory_space=pltpu.MemorySpace.SMEM),   # b
            pl.BlockSpec(block_shape, index_map),                # x tile
        ],
        out_specs=pl.BlockSpec(block_shape, index_map),
        compiler_params=pltpu.CompilerParams(
            dimension_semantics=("parallel",),
            vmem_limit_bytes=VMEM_LIMIT_BYTES,
        ),
        cost_estimate=cost,
    )(a2d, b2d, x2d)

    return out2d.reshape(orig_shape)


if __name__ == "__main__":
    key = jax.random.PRNGKey(0)
    # NCHW input, consistent with a generic PyTorch forward
    x = jax.random.normal(key, (2, 4, 16, 16), dtype=jnp.float32)

    # Deterministic parameter init matching nn.Parameter(torch.tensor(1.0))
    a = jnp.float32(1.0)
    b = jnp.float32(1.0)

    y = ln_model_forward(x, a, b)
    y = jax.block_until_ready(y)

    # Sanity check against pure-JAX reference
    y_ref = a * jnp.log(jnp.abs(b * x))
    assert y.shape == x.shape
    assert y.dtype == x.dtype
    assert jnp.allclose(y, y_ref, atol=1e-6, rtol=1e-6)

    print("KERNEL_OK")
</pallas_src>

<mosaic_0001>
module attributes {stable_mosaic.version = 11 : i64} {
  func.func @ln_kernel(%arg0: i32, %arg1: memref<1x1xf32, #tpu.memory_space<smem>>, %arg2: memref<1x1xf32, #tpu.memory_space<smem>>, %arg3: memref<2x1024xf32, #tpu.memory_space<vmem>>, %arg4: memref<2x1024xf32, #tpu.memory_space<vmem>>) attributes {dimension_semantics = [#tpu.dimension_semantics<parallel>], iteration_bounds = array<i64: 1>, scalar_prefetch = 0 : i64, scratch_operands = 0 : i64, tpu.core_type = #tpu.core_type<tc>, window_params = [{transform_indices = @transform_0, window_bounds = array<i64: 1, 1>}, {transform_indices = @transform_1, window_bounds = array<i64: 1, 1>}, {transform_indices = @transform_2, window_bounds = array<i64: 2, 1024>}, {transform_indices = @transform_3, window_bounds = array<i64: 2, 1024>}]} {
    %c0 = arith.constant 0 : index
    %c0_0 = arith.constant 0 : index
    %0 = memref.load %arg1[%c0, %c0_0] : memref<1x1xf32, #tpu.memory_space<smem>>
    %c0_1 = arith.constant 0 : index
    %c0_2 = arith.constant 0 : index
    %1 = memref.load %arg2[%c0_1, %c0_2] : memref<1x1xf32, #tpu.memory_space<smem>>
    %c0_3 = arith.constant 0 : index
    %c0_4 = arith.constant 0 : index
    %2 = vector.load %arg3[%c0_3, %c0_4] : memref<2x1024xf32, #tpu.memory_space<vmem>>, vector<2x1024xf32>
    %3 = vector.broadcast %1 : f32 to vector<2x1024xf32>
    %4 = arith.mulf %3, %2 : vector<2x1024xf32>
    %5 = math.absf %4 : vector<2x1024xf32>
    %6 = math.log %5 : vector<2x1024xf32>
    %7 = vector.broadcast %0 : f32 to vector<2x1024xf32>
    %8 = arith.mulf %7, %6 : vector<2x1024xf32>
    %c0_5 = arith.constant 0 : index
    %c0_6 = arith.constant 0 : index
    %9 = vector.load %arg4[%c0_5, %c0_6] : memref<2x1024xf32, #tpu.memory_space<vmem>>, vector<2x1024xf32>
    tpu.vector_store %arg4[%c0_5, %c0_6], %8 {strides = array<i32>} : memref<2x1024xf32, #tpu.memory_space<vmem>>, vector<2x1024xf32>,
    return
  }
  func.func @transform_0(%arg0: i32) -> (i32, i32) {
    %c0_i32 = arith.constant 0 : i32
    %c0_i32_0 = arith.constant 0 : i32
    %c0_i32_1 = arith.constant 0 : i32
    return %c0_i32, %c0_i32_0 : i32, i32
  }
  func.func @transform_1(%arg0: i32) -> (i32, i32) {
    %c0_i32 = arith.constant 0 : i32
    %c0_i32_0 = arith.constant 0 : i32
    %c0_i32_1 = arith.constant 0 : i32
    return %c0_i32, %c0_i32_0 : i32, i32
  }
  func.func @transform_2(%arg0: i32) -> (i32, i32) {
    %c0_i32 = arith.constant 0 : i32
    %c0_i32_0 = arith.constant 0 : i32
    return %arg0, %c0_i32 : i32, i32
  }
  func.func @transform_3(%arg0: i32) -> (i32, i32) {
    %c0_i32 = arith.constant 0 : i32
    %c0_i32_0 = arith.constant 0 : i32
    return %arg0, %c0_i32 : i32, i32
  }
}

</mosaic_0001>

<llo_original>
// kernel: tpu_custom_call.1
$region0: #{tpu_custom_call.1}
  #allocation0 [shape = 'u32[]', space=smem, size = 0x4, offset = 0x4, fixed_abs, tag = 'smem constant byte address 0x4 - core index']
  #allocation1 [shape = 'u32[144,128]{1,0:T(1,128)}', space=vmem, size = 0x12000, scoped, tag = 'internal scratch']
  #allocation2 [shape = 'f32[1,1]{1,0:T(1,128)S(6)}', space=smem, size = 0x200, scoped, tag = 'scoped memory for tpu_custom_call.1']
  #allocation3 [shape = 'f32[1,1]{1,0:T(1,128)S(6)}', space=smem, size = 0x200, scoped, tag = 'scoped memory for tpu_custom_call.1']
  %s0 = inlined_call_operand.<no memory space> [shape: f32[1,1], index: 0, kind: input, shape index: {}]
  %s1 = inlined_call_operand.<no memory space> [shape: f32[1,1], index: 1, kind: input, shape index: {}]
  %s2 = inlined_call_operand.hbm [shape: f32[2,1024], index: 2, kind: input, shape index: {}]
  %s3 = inlined_call_operand.hbm [shape: f32[2,1024], index: 3, kind: output, shape index: {}]
  %s4 = sld [smem:[#allocation0]]
  $region26: #{tpu_custom_call.1} parent=0
    _
  %s6 = ssub.s32 1, %s4
  %s7 = scalar_select 0, %s6, %s4
  %8 = sst [smem:[#allocation2]] %s0
  %9 = sst [smem:[#allocation3]] %s1
  $region1: #{tpu_custom_call.1} parent=0
    #allocation4 [shape = 'u8[8192]{0}', space=vmem, size = 0x2000, scoped, tag = 'input window, operand 2, single buffered']
    #allocation5 [shape = 's32[1]{0}', space=sflag, size = 0x4, scoped, tag = 'scoped memory for tpu_custom_call.1']
    #allocation6 [shape = 's32[1]{0}', space=sflag, size = 0x4, scoped, tag = 'scoped memory for tpu_custom_call.1']
    #allocation7 [shape = 'u8[8192]{0}', space=vmem, size = 0x2000, scoped, tag = 'output window, operand 0, single buffered']
    %10 = vsyncpa [#allocation5], 0
    %11 = vsyncpa [#allocation6], 0
    // Predicated region
    $region2: #{tpu_custom_call.1} parent=1 // pred_check
      _
    $region3: #{tpu_custom_call.1} parent=1 // pred_check_branch
      %13 = sbr.rel (0) target = $region5
    $region4: #{tpu_custom_call.1} parent=1 // pred_region
      _
    $region5: #{tpu_custom_call.1} parent=1 // pred_fallthru
      _
    // Predicated region
    $region6: #{tpu_custom_call.1} parent=1 // pred_check
      _
    $region7: #{tpu_custom_call.1} parent=1 // pred_check_branch
      %15 = sbr.rel (0) target = $region9
    $region8: #{tpu_custom_call.1} parent=1 // pred_region
      _
    $region9: #{tpu_custom_call.1} parent=1 // pred_fallthru
      _
    // Predicated region
    $region10: #{tpu_custom_call.1} parent=1 // pred_check
      _
    $region11: #{tpu_custom_call.1} parent=1 // pred_check_branch
      %17 = sbr.rel (0) target = $region13
    $region12: #{tpu_custom_call.1} parent=1 // pred_region
      %s19 = ssub.s32 256, 256
      %20 = vsyncadd [#allocation5], %s19
      %s22 = sshll.u32 [#allocation4], 4
      %s23 = int_to_ptr.vmem [resolvable:$true] %s22
      %25 = dma.hbm_to_vmem [thread:$0]  %s2, 256, %s23, [#allocation5]
    $region13: #{tpu_custom_call.1} parent=1 // pred_fallthru
      _
    // Predicated region
    $region14: #{tpu_custom_call.1} parent=1 // pred_check
      _
    $region15: #{tpu_custom_call.1} parent=1 // pred_check_branch
      %27 = sbr.rel (0) target = $region17
    $region16: #{tpu_custom_call.1} parent=1 // pred_region
      %28 = dma.done [#allocation5], 256
    $region17: #{tpu_custom_call.1} parent=1 // pred_fallthru
      _
    %s29 = sld [smem:[#allocation2]]
    %s30 = sld [smem:[#allocation3]]
    %v31 = vld [vmem:[#allocation4] sm:$0xff]
    %v32 = vld [vmem:[#allocation4 + $0x8] sm:$0xff]
    %v33 = vstv %s30
    %v34 = vmul.f32 %v33, %v31
    %v35 = vmul.f32 %v33, %v32
    %v36 = vand.u32 2147483647, %v34
    %v37 = vand.u32 2147483647, %v35
    %v38 = vlog2.pop %v36
    %v39 = vmul.f32 %v38, 0.6931472
    %v40 = vlog2.pop %v37
    %v41 = vmul.f32 %v40, 0.6931472
    %v42 = vstv %s29
    %v43 = vmul.f32 %v42, %v39
    %v44 = vmul.f32 %v42, %v41
    %45 = vst [vmem:[#allocation7] sm:$0xff] %v43
    %46 = vst [vmem:[#allocation7 + $0x8] sm:$0xff] %v44
    // Predicated region
    $region18: #{tpu_custom_call.1} parent=1 // pred_check
      _
    $region19: #{tpu_custom_call.1} parent=1 // pred_check_branch
      %48 = sbr.rel (0) target = $region21
    $region20: #{tpu_custom_call.1} parent=1 // pred_region
      %s50 = ssub.s32 256, 256
      %51 = vsyncadd [#allocation6], %s50
      %s53 = sshll.u32 [#allocation7], 4
      %s54 = int_to_ptr.vmem [resolvable:$true] %s53
      %56 = dma.vmem_to_hbm [thread:$0]  %s54, 256, %s3, [#allocation6]
    $region21: #{tpu_custom_call.1} parent=1 // pred_fallthru
      _
    // Predicated region
    $region22: #{tpu_custom_call.1} parent=1 // pred_check
      _
    $region23: #{tpu_custom_call.1} parent=1 // pred_check_branch
      %58 = sbr.rel (0) target = $region25
    $region24: #{tpu_custom_call.1} parent=1 // pred_region
      %59 = dma.done [#allocation6], 256
    $region25: #{tpu_custom_call.1} parent=1 // pred_fallthru
      _
    %60 = vsyncpa [#allocation5], 1
    %61 = vsyncpa [#allocation6], 1

</llo_original>
